<compile_context>
chip_gen: v6e
topology: v6e:2x2x1
jax: 0.10.0
libtpu: 0.0.40
codegen_flags: <defaults>
</compile_context>

<pallas_src>
import functools

import jax
import jax.numpy as jnp
from jax.experimental import pallas as pl
from jax.experimental.pallas import tpu as pltpu


def _round_up(x, m):
    return (x + m - 1) // m * m


def _swiglu_kernel_single(x_ref, w1_ref, b1_ref, w2_ref, b2_ref, o_ref, *, th):
    """H fits in one tile: no accumulator scratch, write straight to o_ref."""
    x = x_ref[...]
    h1 = jnp.dot(x, w1_ref[...], preferred_element_type=jnp.float32) + b1_ref[...]
    g = h1[:, :th]
    u = h1[:, th:]
    act = g * jax.nn.sigmoid(g) * u                       # SiLU(gate) * up, f32
    out = jnp.dot(act.astype(w2_ref.dtype), w2_ref[...],
                  preferred_element_type=jnp.float32) + b2_ref[...]
    o_ref[...] = out.astype(o_ref.dtype)


def _swiglu_kernel_stream(x_ref, w1_ref, b1_ref, w2_ref, b2_ref, o_ref,
                          acc_ref, *, th):
    """H streamed th-wide along grid axis 1 (reduction axis, 'arbitrary')."""
    hk = pl.program_id(1)

    x = x_ref[...]
    h1 = jnp.dot(x, w1_ref[...], preferred_element_type=jnp.float32) + b1_ref[...]
    g = h1[:, :th]
    u = h1[:, th:]
    act = g * jax.nn.sigmoid(g) * u
    part = jnp.dot(act.astype(w2_ref.dtype), w2_ref[...],
                   preferred_element_type=jnp.float32)

    @pl.when(hk == 0)
    def _():
        acc_ref[...] = part          # first tile overwrites: no zero-init pass

    @pl.when(hk != 0)
    def _():
        acc_ref[...] += part

    @pl.when(hk == pl.num_programs(1) - 1)
    def _():
        o_ref[...] = (acc_ref[...] + b2_ref[...]).astype(o_ref.dtype)


def swiglu_pallas(x, w1, b1, w2, b2, *, tm=256, th=None):
    """x: (B, S, D). w1: (D, 2H), b1: (2H,), w2: (H, D), b2: (D,).

    Weights are stored pre-transposed relative to nn.Linear so the kernel
    computes x @ W + b.  For best throughput pass bf16 weights/activations
    (accumulation stays f32 via preferred_element_type).
    """
    B, S, D = x.shape
    H = w1.shape[1] // 2
    out_dtype = x.dtype
    wdt = w1.dtype
    wsz = wdt.itemsize
    osz = jnp.dtype(out_dtype).itemsize

    # ---- generation-aware VMEM budget ------------------------------------
    try:
        vmem_cap = int(pltpu.get_tpu_info().vmem_capacity_bytes)
    except Exception:
        vmem_cap = 64 << 20                       # conservative (v7x per-core)
    budget = max(vmem_cap - (8 << 20), 24 << 20)  # Mosaic internal-scratch headroom

    if th is None:
        # 128 MiB VMEM (v5e/v6e): big H tiles -> fewer grid steps / acc passes.
        # 64 MiB (v7x): smaller default so 2x-buffered weight streams always fit.
        th = 1024 if vmem_cap > (80 << 20) else 256
    assert th % 128 == 0

    # ---- lane-dense D: pad to a multiple of 128 (unmasked output stores) --
    Dp = _round_up(D, 128)
    M = B * S
    x2d = x.reshape(M, D)
    if Dp != D:
        dpad = Dp - D
        x2d = jnp.pad(x2d, ((0, 0), (0, dpad)))
        w1 = jnp.pad(w1, ((0, dpad), (0, 0)))
        w2 = jnp.pad(w2, ((0, 0), (0, dpad)))
        b2 = jnp.pad(b2, ((0, dpad),))
    x2d = x2d.astype(wdt)                         # cast once, not per H step
    b2_2d = b2.reshape(1, Dp).astype(jnp.float32)

    # ---- row tiling ("parallel"; >=2 tiles so v7x megacore engages) -------
    sub = max(8, 32 // wsz)                       # 8 sublanes f32, 16 bf16
    tm = _round_up(tm, sub)
    tm_eff = max(sub, min(tm, _round_up(pl.cdiv(M, 2), sub)))
    m_pad = _round_up(M, tm_eff)
    if m_pad != M:
        x2d = jnp.pad(x2d, ((0, m_pad - M), (0, 0)))
    grid_m = m_pad // tm_eff

    # ---- hidden-dim tiling, shrunk to fit the VMEM budget -----------------
    def est_bytes(th_b):
        return (2 * tm_eff * Dp * wsz                 # x stream (2-buffered)
                + 2 * tm_eff * Dp * osz               # out stream
                + 2 * Dp * (2 * th_b) * wsz           # packed [gate|up] w1 stream
                + 2 * 1 * (2 * th_b) * 4              # packed b1 stream
                + 2 * th_b * Dp * wsz                 # w2 stream
                + 1 * Dp * 4                          # b2 (single-buffered)
                + tm_eff * Dp * 4                     # f32 accumulator scratch
                + 3 * tm_eff * (2 * th_b) * 4)        # h1 / act temporaries

    if H <= th:
        th_eff = H
    else:
        th_eff = th
        while th_eff > 128 and int(1.25 * est_bytes(th_eff)) + (4 << 20) > budget:
            th_eff -= 128
    h_pad = _round_up(H, th_eff)
    grid_h = h_pad // th_eff

    # ---- split fc1 into gate/up; repack per-tile-contiguous slabs ---------
    # (zero pads are correctness-safe: silu(0)*0 == 0 and padded w2 rows are 0)
    w1g, w1u = w1[:, :H], w1[:, H:]
    b1g, b1u = b1[:H], b1[H:]
    if h_pad != H:
        hp = h_pad - H
        w1g = jnp.pad(w1g, ((0, 0), (0, hp)))
        w1u = jnp.pad(w1u, ((0, 0), (0, hp)))
        b1g = jnp.pad(b1g, ((0, hp),))
        b1u = jnp.pad(b1u, ((0, hp),))
        w2 = jnp.pad(w2, ((0, hp), (0, 0)))
    # (grid_h, Dp, 2*th): one contiguous DMA + one MXU matmul per grid step.
    w1g_t = w1g.reshape(Dp, grid_h, th_eff).transpose(1, 0, 2)
    w1u_t = w1u.reshape(Dp, grid_h, th_eff).transpose(1, 0, 2)
    w1_pack = jnp.concatenate([w1g_t, w1u_t], axis=-1).astype(wdt)
    b1_pack = jnp.concatenate([b1g.reshape(grid_h, 1, th_eff),
                               b1u.reshape(grid_h, 1, th_eff)],
                              axis=-1).astype(jnp.float32)
    w2_pack = w2.reshape(grid_h, th_eff, Dp).astype(wdt)

    # ---- specs -------------------------------------------------------------
    x_spec = pl.BlockSpec((tm_eff, Dp), lambda i, h: (i, 0))
    w1_spec = pl.BlockSpec((None, Dp, 2 * th_eff), lambda i, h: (h, 0, 0))
    b1_spec = pl.BlockSpec((None, 1, 2 * th_eff), lambda i, h: (h, 0, 0))
    w2_spec = pl.BlockSpec((None, th_eff, Dp), lambda i, h: (h, 0, 0))
    try:    # constant block: single-buffer (no wasted VMEM / per-step DMA)
        b2_spec = pl.BlockSpec((1, Dp), lambda i, h: (0, 0),
                               pipeline_mode=pl.Buffered(1))
    except TypeError:
        b2_spec = pl.BlockSpec((1, Dp), lambda i, h: (0, 0))
    out_spec = pl.BlockSpec((tm_eff, Dp), lambda i, h: (i, 0))

    if grid_h == 1:
        kernel = functools.partial(_swiglu_kernel_single, th=th_eff)
        scratch = []
    else:
        kernel = functools.partial(_swiglu_kernel_stream, th=th_eff)
        scratch = [pltpu.VMEM((tm_eff, Dp), jnp.float32)]

    vmem_limit = int(min(max(int(1.25 * est_bytes(th_eff)) + (4 << 20), 32 << 20),
                         budget))

    cost = pl.CostEstimate(
        flops=6 * m_pad * Dp * h_pad,
        transcendentals=m_pad * h_pad,
        bytes_accessed=(x2d.size * x2d.dtype.itemsize
                        + m_pad * Dp * osz
                        + grid_m * (w1_pack.size + w2_pack.size) * wsz
                        + grid_m * b1_pack.size * 4
                        + Dp * 4))

    out2d = pl.pallas_call(
        kernel,
        out_shape=jax.ShapeDtypeStruct((m_pad, Dp), out_dtype),
        grid_spec=pltpu.PrefetchScalarGridSpec(
            num_scalar_prefetch=0,
            grid=(grid_m, grid_h),
            in_specs=[x_spec, w1_spec, b1_spec, w2_spec, b2_spec],
            out_specs=out_spec,
            scratch_shapes=scratch),
        compiler_params=pltpu.CompilerParams(
            dimension_semantics=("parallel", "arbitrary"),
            vmem_limit_bytes=vmem_limit),
        cost_estimate=cost,
    )(x2d, w1_pack, b1_pack, w2_pack, b2_2d)

    return out2d[:M, :D].reshape(B, S, D)


def swiglu_ref(x, w1, b1, w2, b2):
    h = jnp.einsum("bsd,dh->bsh", x, w1) + b1
    H = h.shape[-1] // 2
    x1, x2 = h[..., :H], h[..., H:]
    g = jax.nn.silu(x1) * x2
    return jnp.einsum("bsh,hd->bsd", g, w2) + b2


if __name__ == "__main__":
    # Module config: dim=32, hidden_features=64, use_bias=True, dropout=0.0 (eval).
    B, S, D, H = 2, 8, 32, 64

    key = jax.random.PRNGKey(0)
    kx, kw1, kb1, kw2, kb2 = jax.random.split(key, 5)

    x = jax.random.normal(kx, (B, S, D), dtype=jnp.float32)
    # nn.Linear weights stored transposed: fc1 (D, 2H), fc2 (H, D).
    w1 = jax.random.normal(kw1, (D, 2 * H), dtype=jnp.float32) * 0.05
    b1 = jax.random.normal(kb1, (2 * H,), dtype=jnp.float32) * 0.05
    w2 = jax.random.normal(kw2, (H, D), dtype=jnp.float32) * 0.05
    b2 = jax.random.normal(kb2, (D,), dtype=jnp.float32) * 0.05

    out = jax.block_until_ready(swiglu_pallas(x, w1, b1, w2, b2))

    ref = swiglu_ref(x, w1, b1, w2, b2)
    assert out.shape == ref.shape
    assert jnp.allclose(out, ref, atol=1e-3, rtol=1e-3), "mismatch vs reference"

    print("KERNEL_OK")
</pallas_src>

<mosaic_0001>
module attributes {stable_mosaic.version = 11 : i64} {
  func.func @_swiglu_kernel_single(%arg0: i32, %arg1: i32, %arg2: memref<8x128xf32, #tpu.memory_space<vmem>>, %arg3: memref<1x128x128xf32, #tpu.memory_space<vmem>>, %arg4: memref<1x1x128xf32, #tpu.memory_space<vmem>>, %arg5: memref<1x64x128xf32, #tpu.memory_space<vmem>>, %arg6: memref<1x128xf32, #tpu.memory_space<vmem>>, %arg7: memref<8x128xf32, #tpu.memory_space<vmem>>) attributes {dimension_semantics = [#tpu.dimension_semantics<parallel>, #tpu.dimension_semantics<arbitrary>], iteration_bounds = array<i64: 2, 1>, scalar_prefetch = 0 : i64, scratch_operands = 0 : i64, tpu.core_type = #tpu.core_type<tc>, window_params = [{transform_indices = @transform_0, window_bounds = array<i64: 8, 128>}, {transform_indices = @transform_1, window_bounds = array<i64: 1, 128, 128>}, {transform_indices = @transform_2, window_bounds = array<i64: 1, 1, 128>}, {transform_indices = @transform_3, window_bounds = array<i64: 1, 64, 128>}, {pipeline_mode = #tpu.pipeline_mode<synchronous>, transform_indices = @transform_4, window_bounds = array<i64: 1, 128>}, {transform_indices = @transform_5, window_bounds = array<i64: 8, 128>}]} {
    %c0 = arith.constant 0 : index
    %c0_0 = arith.constant 0 : index
    %0 = vector.load %arg2[%c0, %c0_0] : memref<8x128xf32, #tpu.memory_space<vmem>>, vector<8x128xf32>
    %c0_1 = arith.constant 0 : index
    %c0_2 = arith.constant 0 : index
    %c0_3 = arith.constant 0 : index
    %1 = vector.load %arg3[%c0_1, %c0_2, %c0_3] : memref<1x128x128xf32, #tpu.memory_space<vmem>>, vector<1x128x128xf32>
    %2 = vector.shape_cast %1 : vector<1x128x128xf32> to vector<128x128xf32>
    %cst = arith.constant dense<0.000000e+00> : vector<8x128xf32>
    %3 = tpu.matmul %0, %2, %cst {dimension_numbers = #tpu.dot_dimension_numbers<[1], [0], [0], [1], [0, 0, 1, 1], [], []>} : vector<8x128xf32>, vector<128x128xf32>, vector<8x128xf32> -> vector<8x128xf32>
    %c0_4 = arith.constant 0 : index
    %c0_5 = arith.constant 0 : index
    %c0_6 = arith.constant 0 : index
    %4 = vector.load %arg4[%c0_4, %c0_5, %c0_6] : memref<1x1x128xf32, #tpu.memory_space<vmem>>, vector<1x1x128xf32>
    %5 = vector.shape_cast %4 : vector<1x1x128xf32> to vector<1x128xf32>
    %6 = vector.broadcast %5 : vector<1x128xf32> to vector<8x128xf32>
    %7 = arith.addf %3, %6 : vector<8x128xf32>
    %8 = vector.extract_strided_slice %7 {offsets = [0, 0], sizes = [8, 64], strides = [1, 1]} : vector<8x128xf32> to vector<8x64xf32>
    %9 = vector.extract_strided_slice %7 {offsets = [0, 64], sizes = [8, 64], strides = [1, 1]} : vector<8x128xf32> to vector<8x64xf32>
    %10 = arith.negf %8 : vector<8x64xf32>
    %11 = math.exp %10 : vector<8x64xf32>
    %cst_7 = arith.constant 1.000000e+00 : f32
    %12 = vector.broadcast %cst_7 : f32 to vector<8x64xf32>
    %13 = arith.addf %12, %11 : vector<8x64xf32>
    %14 = arith.divf %12, %13 : vector<8x64xf32>
    %15 = arith.mulf %8, %14 : vector<8x64xf32>
    %16 = arith.mulf %15, %9 : vector<8x64xf32>
    %c0_8 = arith.constant 0 : index
    %c0_9 = arith.constant 0 : index
    %c0_10 = arith.constant 0 : index
    %17 = vector.load %arg5[%c0_8, %c0_9, %c0_10] : memref<1x64x128xf32, #tpu.memory_space<vmem>>, vector<1x64x128xf32>
    %18 = vector.shape_cast %17 : vector<1x64x128xf32> to vector<64x128xf32>
    %cst_11 = arith.constant dense<0.000000e+00> : vector<8x128xf32>
    %19 = tpu.matmul %16, %18, %cst_11 {dimension_numbers = #tpu.dot_dimension_numbers<[1], [0], [0], [1], [0, 0, 1, 1], [], []>} : vector<8x64xf32>, vector<64x128xf32>, vector<8x128xf32> -> vector<8x128xf32>
    %c0_12 = arith.constant 0 : index
    %c0_13 = arith.constant 0 : index
    %20 = vector.load %arg6[%c0_12, %c0_13] : memref<1x128xf32, #tpu.memory_space<vmem>>, vector<1x128xf32>
    %21 = vector.broadcast %20 : vector<1x128xf32> to vector<8x128xf32>
    %22 = arith.addf %19, %21 : vector<8x128xf32>
    %c0_14 = arith.constant 0 : index
    %c0_15 = arith.constant 0 : index
    %23 = vector.load %arg7[%c0_14, %c0_15] : memref<8x128xf32, #tpu.memory_space<vmem>>, vector<8x128xf32>
    tpu.vector_store %arg7[%c0_14, %c0_15], %22 {strides = array<i32>} : memref<8x128xf32, #tpu.memory_space<vmem>>, vector<8x128xf32>,
    return
  }
  func.func @transform_0(%arg0: i32, %arg1: i32) -> (i32, i32) {
    %c0_i32 = arith.constant 0 : i32
    %c0_i32_0 = arith.constant 0 : i32
    return %arg0, %c0_i32 : i32, i32
  }
  func.func @transform_1(%arg0: i32, %arg1: i32) -> (i32, i32, i32) {
    %c0_i32 = arith.constant 0 : i32
    %c0_i32_0 = arith.constant 0 : i32
    %c0_i32_1 = arith.constant 0 : i32
    return %arg1, %c0_i32, %c0_i32_0 : i32, i32, i32
  }
  func.func @transform_2(%arg0: i32, %arg1: i32) -> (i32, i32, i32) {
    %c0_i32 = arith.constant 0 : i32
    %c0_i32_0 = arith.constant 0 : i32
    %c0_i32_1 = arith.constant 0 : i32
    return %arg1, %c0_i32, %c0_i32_0 : i32, i32, i32
  }
  func.func @transform_3(%arg0: i32, %arg1: i32) -> (i32, i32, i32) {
    %c0_i32 = arith.constant 0 : i32
    %c0_i32_0 = arith.constant 0 : i32
    %c0_i32_1 = arith.constant 0 : i32
    return %arg1, %c0_i32, %c0_i32_0 : i32, i32, i32
  }
  func.func @transform_4(%arg0: i32, %arg1: i32) -> (i32, i32) {
    %c0_i32 = arith.constant 0 : i32
    %c0_i32_0 = arith.constant 0 : i32
    %c0_i32_1 = arith.constant 0 : i32
    return %c0_i32, %c0_i32_0 : i32, i32
  }
  func.func @transform_5(%arg0: i32, %arg1: i32) -> (i32, i32) {
    %c0_i32 = arith.constant 0 : i32
    %c0_i32_0 = arith.constant 0 : i32
    return %arg0, %c0_i32 : i32, i32
  }
}

</mosaic_0001>

<llo_original>
// kernel: tpu_custom_call.1
$region0: #{tpu_custom_call.1}
  #allocation0 [shape = 'u32[]', space=smem, size = 0x4, offset = 0x4, fixed_abs, tag = 'smem constant byte address 0x4 - core index']
  #allocation1 [shape = 'u32[144,128]{1,0:T(1,128)}', space=vmem, size = 0x12000, scoped, tag = 'internal scratch']
  %s0 = inlined_call_operand.hbm [shape: f32[16,128], index: 0, kind: input, shape index: {}]
  %s1 = inlined_call_operand.hbm [shape: f32[1,128,128], index: 1, kind: input, shape index: {}]
  %s2 = inlined_call_operand.vmem [shape: f32[1,1,128], index: 2, kind: input, shape index: {}]
  %s3 = inlined_call_operand.hbm [shape: f32[1,64,128], index: 3, kind: input, shape index: {}]
  %s4 = inlined_call_operand.vmem [shape: f32[1,128], index: 4, kind: input, shape index: {}]
  %s5 = inlined_call_operand.hbm [shape: f32[16,128], index: 5, kind: output, shape index: {}]
  %s6 = sld [smem:[#allocation0]]
  $region65: #{tpu_custom_call.1} parent=0
    _
  %s8 = ssub.s32 1, %s6
  %s9 = scalar_select 0, %s8, %s6
  $region1: #{tpu_custom_call.1} parent=0
    #allocation2 [shape = 'u8[8192]{0}', space=vmem, size = 0x2000, scoped, tag = 'input window, operand 0']
    #allocation3 [shape = 's32[2]{0}', space=sflag, size = 0x8, scoped, tag = 'scoped memory for tpu_custom_call.1']
    #allocation4 [shape = 's32[2]{0}', space=sflag, size = 0x8, scoped, tag = 'scoped memory for tpu_custom_call.1']
    #allocation5 [shape = 'u8[65536]{0}', space=vmem, size = 0x10000, scoped, tag = 'input window, operand 1, single buffered']
    #allocation6 [shape = 's32[1]{0}', space=sflag, size = 0x4, scoped, tag = 'scoped memory for tpu_custom_call.1']
    #allocation7 [shape = 'u8[32768]{0}', space=vmem, size = 0x8000, scoped, tag = 'input window, operand 3, single buffered']
    #allocation8 [shape = 'u8[8192]{0}', space=vmem, size = 0x2000, scoped, tag = 'output window, operand 0']
    %10 = vsyncpa [#allocation3], 0
    %s11 = scalar_lea.sflag [#allocation3], 1
    %12 = vsyncpa %s11, 0
    %13 = vsyncpa [#allocation6], 0
    %14 = vsyncpa [#allocation4], 0
    %s15 = scalar_lea.sflag [#allocation4], 1
    %16 = vsyncpa %s15, 0
    loop: start=0, step=1, limit=4
    $region2: #{tpu_custom_call.1} parent=1 // loop_pre_header
      _
    $region3: #{tpu_custom_call.1} parent=1 // loop_header
      %s18 = sphi 0, %s22
      %p19 = scmp.ge.s32.totalorder %s18, 4
      %s25 = sphi 0, %s37
      %s26 = sphi 0, %s33
      %s27 = sphi 0, %s25
      %s28 = sphi 0, %s26
      %s29 = sphi 0, %s27
      %s30 = sphi 0, %s28
      %s40 = sphi 0, %s42
      %s43 = sphi 0, %s40
      %s44 = sphi 0, %s43
      %s60 = sphi 0, %s44
      %s66 = sphi 0, %s68
      %s69 = sphi 0, %s66
      %s70 = sphi 0, %s69
      %s86 = sphi 0, %s70
      %s92 = sphi 0, %s94
      %s95 = sphi 0, %s92
      %s96 = sphi 0, %s95
      %s112 = sphi 0, %s96
      %s118 = sphi 0, %s120
      %s121 = sphi 0, %s118
      %s122 = sphi 0, %s121
      %s138 = sphi 0, %s122
      %s142 = sphi 0, %s142
      %s144 = sphi 0, %s142
      %s145 = sphi 0, %s144
      %s159 = sphi 0, %s145
      %s165 = sphi 0, %s167
      %s168 = sphi 0, %s165
      %s169 = sphi 0, %s168
      %s185 = sphi 0, %s169
    $region4: #{tpu_custom_call.1} parent=1 // loop_header_branch
      %21 = sbr.rel (%p19) target = $region8
    $region5: #{tpu_custom_call.1} parent=1 // loop_body
      %s23 = ssub.s32 %s18, 1
      %s24 = ssub.s32 %s18, 2
      %s31 = sadd.s32 1, %s26
      %p32 = scmp.ge.s32.totalorder %s31, 1
      %s33 = scalar_select %p32, 0, %s31
      %s34 = sadd.s32 1, %s25
      %s35 = scalar_select %p32, %s34, %s25
      %p36 = scmp.ge.s32.totalorder %s35, 2
      %s37 = scalar_select %p36, 0, %s35
      %s38 = ssub.s32 %s25, %s37
      %p39 = scmp.eq.s32.totalorder %s38, 0
      %s41 = sadd.s32 %s40, 1
      %s42 = scalar_select %p39, %s40, %s41
      %p45 = pneg %p39
      %p46 = scmp.eq.s32.totalorder %s18, 1
      %p47 = por %p45, %p46
      %p48 = scmp.ne.s32.totalorder %s40, %s43
      %p49 = scmp.eq.s32.totalorder %s18, 0
      %p50 = por %p48, %p49
      %p51 = scmp.ne.s32.totalorder %s40, %s43
      %p52 = scmp.eq.s32.totalorder %s23, 1
      %p53 = por %p51, %p52
      %p54 = scmp.ne.s32.totalorder %s43, %s44
      %p55 = scmp.eq.s32.totalorder %s23, 0
      %p56 = por %p54, %p55
      %p57 = scmp.ne.s32.totalorder %s43, %s44
      %p58 = scmp.eq.s32.totalorder %s24, 1
      %p59 = por %p57, %p58
      %p61 = scmp.ne.s32.totalorder %s44, %s60
      %p62 = scmp.eq.s32.totalorder %s24, 0
      %p63 = por %p61, %p62
      %s64 = ssub.s32 %s26, %s33
      %p65 = scmp.eq.s32.totalorder %s64, 0
      %s67 = sadd.s32 %s66, 1
      %s68 = scalar_select %p65, %s66, %s67
      %p71 = pneg %p65
      %p72 = scmp.eq.s32.totalorder %s18, 1
      %p73 = por %p71, %p72
      %p74 = scmp.ne.s32.totalorder %s66, %s69
      %p75 = scmp.eq.s32.totalorder %s18, 0
      %p76 = por %p74, %p75
      %p77 = scmp.ne.s32.totalorder %s66, %s69
      %p78 = scmp.eq.s32.totalorder %s23, 1
      %p79 = por %p77, %p78
      %p80 = scmp.ne.s32.totalorder %s69, %s70
      %p81 = scmp.eq.s32.totalorder %s23, 0
      %p82 = por %p80, %p81
      %p83 = scmp.ne.s32.totalorder %s69, %s70
      %p84 = scmp.eq.s32.totalorder %s24, 1
      %p85 = por %p83, %p84
      %p87 = scmp.ne.s32.totalorder %s70, %s86
      %p88 = scmp.eq.s32.totalorder %s24, 0
      %p89 = por %p87, %p88
      %s90 = ssub.s32 %s26, %s33
      %p91 = scmp.eq.s32.totalorder %s90, 0
      %s93 = sadd.s32 %s92, 1
      %s94 = scalar_select %p91, %s92, %s93
      %p97 = pneg %p91
      %p98 = scmp.eq.s32.totalorder %s18, 1
      %p99 = por %p97, %p98
      %p100 = scmp.ne.s32.totalorder %s92, %s95
      %p101 = scmp.eq.s32.totalorder %s18, 0
      %p102 = por %p100, %p101
      %p103 = scmp.ne.s32.totalorder %s92, %s95
      %p104 = scmp.eq.s32.totalorder %s23, 1
      %p105 = por %p103, %p104
      %p106 = scmp.ne.s32.totalorder %s95, %s96
      %p107 = scmp.eq.s32.totalorder %s23, 0
      %p108 = por %p106, %p107
      %p109 = scmp.ne.s32.totalorder %s95, %s96
      %p110 = scmp.eq.s32.totalorder %s24, 1
      %p111 = por %p109, %p110
      %p113 = scmp.ne.s32.totalorder %s96, %s112
      %p114 = scmp.eq.s32.totalorder %s24, 0
      %p115 = por %p113, %p114
      %s116 = ssub.s32 %s26, %s33
      %p117 = scmp.eq.s32.totalorder %s116, 0
      %s119 = sadd.s32 %s118, 1
      %s120 = scalar_select %p117, %s118, %s119
      %p123 = pneg %p117
      %p124 = scmp.eq.s32.totalorder %s18, 1
      %p125 = por %p123, %p124
      %p126 = scmp.ne.s32.totalorder %s118, %s121
      %p127 = scmp.eq.s32.totalorder %s18, 0
      %p128 = por %p126, %p127
      %p129 = scmp.ne.s32.totalorder %s118, %s121
      %p130 = scmp.eq.s32.totalorder %s23, 1
      %p131 = por %p129, %p130
      %p132 = scmp.ne.s32.totalorder %s121, %s122
      %p133 = scmp.eq.s32.totalorder %s23, 0
      %p134 = por %p132, %p133
      %p135 = scmp.ne.s32.totalorder %s121, %s122
      %p136 = scmp.eq.s32.totalorder %s24, 1
      %p137 = por %p135, %p136
      %p139 = scmp.ne.s32.totalorder %s122, %s138
      %p140 = scmp.eq.s32.totalorder %s24, 0
      %p141 = por %p139, %p140
      %s143 = sadd.s32 %s142, 1
      %p146 = scmp.eq.s32.totalorder %s18, 1
      %p147 = scmp.ne.s32.totalorder %s142, %s144
      %p148 = scmp.eq.s32.totalorder %s18, 0
      %p149 = por %p147, %p148
      %p150 = scmp.ne.s32.totalorder %s142, %s144
      %p151 = scmp.eq.s32.totalorder %s23, 1
      %p152 = por %p150, %p151
      %p153 = scmp.ne.s32.totalorder %s144, %s145
      %p154 = scmp.eq.s32.totalorder %s23, 0
      %p155 = por %p153, %p154
      %p156 = scmp.ne.s32.totalorder %s144, %s145
      %p157 = scmp.eq.s32.totalorder %s24, 1
      %p158 = por %p156, %p157
      %p160 = scmp.ne.s32.totalorder %s145, %s159
      %p161 = scmp.eq.s32.totalorder %s24, 0
      %p162 = por %p160, %p161
      %s163 = ssub.s32 %s25, %s37
      %p164 = scmp.eq.s32.totalorder %s163, 0
      %s166 = sadd.s32 %s165, 1
      %s167 = scalar_select %p164, %s165, %s166
      %p170 = pneg %p164
      %p171 = scmp.eq.s32.totalorder %s18, 1
      %p172 = por %p170, %p171
      %p173 = scmp.ne.s32.totalorder %s165, %s168
      %p174 = scmp.eq.s32.totalorder %s18, 0
      %p175 = por %p173, %p174
      %p176 = scmp.ne.s32.totalorder %s165, %s168
      %p177 = scmp.eq.s32.totalorder %s23, 1
      %p178 = por %p176, %p177
      %p179 = scmp.ne.s32.totalorder %s168, %s169
      %p180 = scmp.eq.s32.totalorder %s23, 0
      %p181 = por %p179, %p180
      %p182 = scmp.ne.s32.totalorder %s168, %s169
      %p183 = scmp.eq.s32.totalorder %s24, 1
      %p184 = por %p182, %p183
      %p186 = scmp.ne.s32.totalorder %s169, %s185
      %p187 = scmp.eq.s32.totalorder %s24, 0
      %p188 = por %p186, %p187
      %p189 = scmp.le.s32.totalorder 1, %s18
      %p190 = scmp.lt.s32.totalorder %s18, 3
      %p191 = pnand %p189, %p190
      %p192 = pneg %p191
      // Predicated region
      $region9: #{tpu_custom_call.1} parent=5 // pred_check
        _
      $region10: #{tpu_custom_call.1} parent=5 // pred_check_branch
        %194 = sbr.rel (%p191) target = $region12
      $region11: #{tpu_custom_call.1} parent=5 // pred_region
        %s195 = ssub.s32 %s18, 1
        // Predicated region
        $region13: #{tpu_custom_call.1} parent=11 // pred_check
          %p196 = pneg %p82
        $region14: #{tpu_custom_call.1} parent=11 // pred_check_branch
          %198 = sbr.rel (%p196) target = $region16
        $region15: #{tpu_custom_call.1} parent=11 // pred_region
          %s200 = ssub.s32 2048, 2048
          %201 = vsyncadd [#allocation6], %s200
          %s202 = smul.addr %s28, 16
          %s203 = smul.addr %s202, 128
          %s204 = scalar_lea.hbm %s1, %s203
          %s205 = sshll.u32 [#allocation5], 4
          %s206 = int_to_ptr.vmem [resolvable:$true] %s205
          %211 = dma.hbm_to_vmem [thread:$0]  %s204, 2048, %s206, [#allocation6], 128, 128, 8
        $region16: #{tpu_custom_call.1} parent=11 // pred_fallthru
          _
        // Predicated region
        $region17: #{tpu_custom_call.1} parent=11 // pred_check
          %p212 = pneg %p108
        $region18: #{tpu_custom_call.1} parent=11 // pred_check_branch
          %214 = sbr.rel (%p212) target = $region20
        $region19: #{tpu_custom_call.1} parent=11 // pred_region
          %p215 = scmp.lt.s32.totalorder %s28, 0
          %s216 = scalar_select %p215, %s28, 0
          %s217 = scalar_lea.vmem %s2, %s216
        $region20: #{tpu_custom_call.1} parent=11 // pred_fallthru
          _
        // Predicated region
        $region21: #{tpu_custom_call.1} parent=11 // pred_check
          %p218 = pneg %p134
        $region22: #{tpu_custom_call.1} parent=11 // pred_check_branch
          %220 = sbr.rel (%p218) target = $region24
        $region23: #{tpu_custom_call.1} parent=11 // pred_region
          %s222 = ssub.s32 1024, 1024
          %223 = vsyncadd [#allocation6], %s222
          %s224 = smul.addr %s28, 8
          %s225 = smul.addr %s224, 128
          %s226 = scalar_lea.hbm %s3, %s225
          %s227 = sshll.u32 [#allocation7], 4
          %s228 = int_to_ptr.vmem [resolvable:$true] %s227
          %233 = dma.hbm_to_vmem [thread:$0]  %s226, 1024, %s228, [#allocation6], 128, 128, 8
        $region24: #{tpu_custom_call.1} parent=11 // pred_fallthru
          _
        // Predicated region
        $region25: #{tpu_custom_call.1} parent=11 // pred_check
          %p234 = pneg %p155
        $region26: #{tpu_custom_call.1} parent=11 // pred_check_branch
          %236 = sbr.rel (%p234) target = $region28
        $region27: #{tpu_custom_call.1} parent=11 // pred_region
          _
        $region28: #{tpu_custom_call.1} parent=11 // pred_fallthru
          _
      $region12: #{tpu_custom_call.1} parent=5 // pred_fallthru
        _
      %p237 = scmp.lt.s32.totalorder %s18, 2
      // Predicated region
      $region29: #{tpu_custom_call.1} parent=5 // pred_check
        %p238 = pneg %p237
      $region30: #{tpu_custom_call.1} parent=5 // pred_check_branch
        %240 = sbr.rel (%p238) target = $region32
      $region31: #{tpu_custom_call.1} parent=5 // pred_region
        // Predicated region
        $region33: #{tpu_custom_call.1} parent=31 // pred_check
          %p241 = pneg %p50
        $region34: #{tpu_custom_call.1} parent=31 // pred_check_branch
          %243 = sbr.rel (%p241) target = $region36
        $region35: #{tpu_custom_call.1} parent=31 // pred_region
          %s244 = sand.u32 %s40, 1
          %s245 = scalar_lea.sflag [#allocation3], %s244
          %s246 = sand.u32 %s40, 1
          %s247 = smul.addr %s246, 8
          %s248 = scalar_lea.vmem [#allocation2], %s247
          %s250 = ssub.s32 128, 128
          %251 = vsyncadd %s245, %s250
          %s252 = smul.addr %s25, 128
          %s253 = scalar_lea.hbm %s0, %s252
          %s255 = sshll.u32 %s248, 4
          %s256 = int_to_ptr.vmem [resolvable:$true] %s255
          %258 = dma.hbm_to_vmem [thread:$0]  %s253, 128, %s256, %s245
        $region36: #{tpu_custom_call.1} parent=31 // pred_fallthru
          _
      $region32: #{tpu_custom_call.1} parent=5 // pred_fallthru
        _
      %p259 = scmp.le.s32.totalorder 1, %s18
      %p260 = scmp.lt.s32.totalorder %s18, 3
      %p261 = pnand %p259, %p260
      %p262 = pneg %p261
      // Predicated region
      $region37: #{tpu_custom_call.1} parent=5 // pred_check
        _
      $region38: #{tpu_custom_call.1} parent=5 // pred_check_branch
        %264 = sbr.rel (%p261) target = $region40
      $region39: #{tpu_custom_call.1} parent=5 // pred_region
        %s265 = ssub.s32 %s18, 1
        %s266 = sand.u32 %s43, 1
        %s267 = scalar_lea.sflag [#allocation3], %s266
        %s268 = sand.u32 %s43, 1
        %s269 = smul.addr %s268, 8
        %s270 = scalar_lea.vmem [#allocation2], %s269
        // Predicated region
        $region41: #{tpu_custom_call.1} parent=39 // pred_check
          %p271 = pneg %p56
        $region42: #{tpu_custom_call.1} parent=39 // pred_check_branch
          %273 = sbr.rel (%p271) target = $region44
        $region43: #{tpu_custom_call.1} parent=39 // pred_region
          %274 = dma.done %s267, 128
        $region44: #{tpu_custom_call.1} parent=39 // pred_fallthru
          _
        // Predicated region
        $region45: #{tpu_custom_call.1} parent=39 // pred_check
          %p275 = pneg %p82
        $region46: #{tpu_custom_call.1} parent=39 // pred_check_branch
          %277 = sbr.rel (%p275) target = $region48
        $region47: #{tpu_custom_call.1} parent=39 // pred_region
          %278 = dma.done [#allocation6], 2048
        $region48: #{tpu_custom_call.1} parent=39 // pred_fallthru
          _
        // Predicated region
        $region49: #{tpu_custom_call.1} parent=39 // pred_check
          %p279 = pneg %p134
        $region50: #{tpu_custom_call.1} parent=39 // pred_check_branch
          %281 = sbr.rel (%p279) target = $region52
        $region51: #{tpu_custom_call.1} parent=39 // pred_region
          %282 = dma.done [#allocation6], 1024
        $region52: #{tpu_custom_call.1} parent=39 // pred_fallthru
          _
        %s283 = sand.u32 %s43, 1
        %s284 = scalar_lea.sflag [#allocation3], %s283
        %s285 = sand.u32 %s43, 1
        %s286 = smul.addr %s285, 8
        %s287 = scalar_lea.vmem [#allocation2], %s286
        %p288 = pneg %p56
        %p289 = pneg %p53
        %p290 = pneg %p82
        %p291 = pneg %p79
        %p292 = scmp.lt.s32.totalorder %s28, 0
        %s293 = scalar_select %p292, %s28, 0
        %s294 = scalar_lea.vmem %s2, %s293
        %p295 = pneg %p108
        %p296 = pneg %p105
        %p297 = pneg %p134
        %p298 = pneg %p131
        %p299 = pneg %p155
        %p300 = pneg %p152
        %p301 = pneg %p181
        %p302 = pneg %p178
        %s303 = sand.u32 %s168, 1
        %s304 = scalar_lea.sflag [#allocation4], %s303
        %s305 = sand.u32 %s168, 1
        %s306 = smul.addr %s305, 8
        %s307 = scalar_lea.vmem [#allocation8], %s306
        %p308 = scmp.lt.s32.totalorder %s28, 0
        %s309 = scalar_select %p308, %s28, 0
        %s310 = scalar_lea.vmem %s2, %s309
        %v311 = vld [vmem:[%s270] sm:$0xff]
        %v312 = vld [vmem:[#allocation5] sm:$0xff]
        %v313 = vld [vmem:[#allocation5 + $0x8] sm:$0xff]
        %v314 = vld [vmem:[#allocation5 + $0x10] sm:$0xff]
        %v315 = vld [vmem:[#allocation5 + $0x18] sm:$0xff]
        %v316 = vld [vmem:[#allocation5 + $0x20] sm:$0xff]
        %v317 = vld [vmem:[#allocation5 + $0x28] sm:$0xff]
        %v318 = vld [vmem:[#allocation5 + $0x30] sm:$0xff]
        %v319 = vld [vmem:[#allocation5 + $0x38] sm:$0xff]
        %v320 = vld [vmem:[#allocation5 + $0x40] sm:$0xff]
        %v321 = vld [vmem:[#allocation5 + $0x48] sm:$0xff]
        %v322 = vld [vmem:[#allocation5 + $0x50] sm:$0xff]
        %v323 = vld [vmem:[#allocation5 + $0x58] sm:$0xff]
        %v324 = vld [vmem:[#allocation5 + $0x60] sm:$0xff]
        %v325 = vld [vmem:[#allocation5 + $0x68] sm:$0xff]
        %v326 = vld [vmem:[#allocation5 + $0x70] sm:$0xff]
        %v327 = vld [vmem:[#allocation5 + $0x78] sm:$0xff]
        %v328 = vld [vmem:[%s310] sm:$0x1]
        %v330 = vlaneseq
        %v331 = vshrl.u32 %v330, 7
        %v332 = vsub.s32 0, %v331
        %v333 = vrot.slane %v328, %v332
        %335 = vmatprep.subr.mxu0 0.0
        %336 = vmatpush1.msra.mxu0 %v327
        %337 = vmatprep.subr.mxu0 0.0
        %338 = vmatpush1.msra.mxu0 %v326
        %339 = vmatprep.subr.mxu0 0.0
        %340 = vmatpush1.msra.mxu0 %v325
        %341 = vmatprep.subr.mxu0 0.0
        %342 = vmatpush1.msra.mxu0 %v324
        %343 = vmatprep.subr.mxu0 0.0
        %344 = vmatpush1.msra.mxu0 %v323
        %345 = vmatprep.subr.mxu0 0.0
        %346 = vmatpush1.msra.mxu0 %v322
        %347 = vmatprep.subr.mxu0 0.0
        %348 = vmatpush1.msra.mxu0 %v321
        %349 = vmatprep.subr.mxu0 0.0
        %350 = vmatpush1.msra.mxu0 %v320
        %351 = vmatprep.subr.mxu0 0.0
        %352 = vmatpush1.msra.mxu0 %v319
        %353 = vmatprep.subr.mxu0 0.0
        %354 = vmatpush1.msra.mxu0 %v318
        %355 = vmatprep.subr.mxu0 0.0
        %356 = vmatpush1.msra.mxu0 %v317
        %357 = vmatprep.subr.mxu0 0.0
        %358 = vmatpush1.msra.mxu0 %v316
        %359 = vmatprep.subr.mxu0 0.0
        %360 = vmatpush1.msra.mxu0 %v315
        %361 = vmatprep.subr.mxu0 0.0
        %362 = vmatpush1.msra.mxu0 %v314
        %363 = vmatprep.subr.mxu0 0.0
        %364 = vmatpush1.msra.mxu0 %v313
        %365 = vmatprep.subr.mxu0 0.0
        %366 = vmatpush1.msra.mxu0 %v312
        %367 = vmatprep.subr.mxu0 0.0
        %368 = vmatpush2.msra.mxu0 0.0
        %369 = vmatprep.subr.mxu0 0.0
        %370 = vmatpush2.msra.mxu0 0.0
        %371 = vmatprep.subr.mxu0 0.0
        %372 = vmatpush2.msra.mxu0 0.0
        %373 = vmatprep.subr.mxu0 0.0
        %374 = vmatpush2.msra.mxu0 0.0
        %375 = vmatprep.subr.mxu0 0.0
        %376 = vmatpush2.msra.mxu0 0.0
        %377 = vmatprep.subr.mxu0 0.0
        %378 = vmatpush2.msra.mxu0 0.0
        %379 = vmatprep.subr.mxu0 0.0
        %380 = vmatpush2.msra.mxu0 0.0
        %381 = vmatprep.subr.mxu0 0.0
        %382 = vmatpush2.msra.mxu0 0.0
        %383 = vmatprep.subr.mxu0 0.0
        %384 = vmatpush2.msra.mxu0 0.0
        %385 = vmatprep.subr.mxu0 0.0
        %386 = vmatpush2.msra.mxu0 0.0
        %387 = vmatprep.subr.mxu0 0.0
        %388 = vmatpush2.msra.mxu0 0.0
        %389 = vmatprep.subr.mxu0 0.0
        %390 = vmatpush2.msra.mxu0 0.0
        %391 = vmatprep.subr.mxu0 0.0
        %392 = vmatpush2.msra.mxu0 0.0
        %393 = vmatprep.subr.mxu0 0.0
        %394 = vmatpush2.msra.mxu0 0.0
        %395 = vmatprep.subr.mxu0 0.0
        %396 = vmatpush2.msra.mxu0 0.0
        %397 = vmatprep.subr.mxu0 0.0
        %398 = vmatpush2.msra.mxu0 0.0
        %399 = vmatprep.mubr.f32.mxu0 0.0
        %400 = vmatmul.mubr.f32.gmra.mxu0 %v311
        %v401 = vpop.f32.mrf.mxu0
        %v402 = vadd.f32 %v333, %v401
        %v403 = vpop.f32.mrf.mxu0
        %404 = vdwg.mxu0
        %v405 = vxor.u32 %v402, 2147483648
        %v406 = vmul.f32 %v405, 1.442695
        %v407 = vpow.pop %v406
        %v408 = vadd.f32 %v407, 1.0
        %v409 = vrcp.pop %v408
        %v410 = vmul.f32 1.0, %v409
        %v411 = vmul.f32 %v402, %v410
        %413 = vrot.lane.b32.xlu0 %v402, 64
        %v414 = vpop.permute.xlu0 %413
        %v416 = vmul.f32 %v411, %v414
        %v417 = vld [vmem:[#allocation7] sm:$0xff]
        %v418 = vld [vmem:[#allocation7 + $0x8] sm:$0xff]
        %v419 = vld [vmem:[#allocation7 + $0x10] sm:$0xff]
        %v420 = vld [vmem:[#allocation7 + $0x18] sm:$0xff]
        %v421 = vld [vmem:[#allocation7 + $0x20] sm:$0xff]
        %v422 = vld [vmem:[#allocation7 + $0x28] sm:$0xff]
        %v423 = vld [vmem:[#allocation7 + $0x30] sm:$0xff]
        %v424 = vld [vmem:[#allocation7 + $0x38] sm:$0xff]
        %v425 = vld [vmem:[%s4] sm:$0x1]
        %v427 = vlaneseq
        %v428 = vshrl.u32 %v427, 7
        %v429 = vsub.s32 0, %v428
        %v430 = vrot.slane %v425, %v429
        %vm432 = vcmask 523264
        %v434 = vsel %vm432, %v416, 0
        %436 = vmatprep.subr.mxu0 0.0
        %437 = vmatpush1.msra.mxu0 0.0
        %438 = vmatprep.subr.mxu0 0.0
        %439 = vmatpush1.msra.mxu0 0.0
        %440 = vmatprep.subr.mxu0 0.0
        %441 = vmatpush1.msra.mxu0 0.0
        %442 = vmatprep.subr.mxu0 0.0
        %443 = vmatpush1.msra.mxu0 0.0
        %444 = vmatprep.subr.mxu0 0.0
        %445 = vmatpush1.msra.mxu0 0.0
        %446 = vmatprep.subr.mxu0 0.0
        %447 = vmatpush1.msra.mxu0 0.0
        %448 = vmatprep.subr.mxu0 0.0
        %449 = vmatpush1.msra.mxu0 0.0
        %450 = vmatprep.subr.mxu0 0.0
        %451 = vmatpush1.msra.mxu0 0.0
        %452 = vmatprep.subr.mxu0 0.0
        %453 = vmatpush1.msra.mxu0 %v424
        %454 = vmatprep.subr.mxu0 0.0
        %455 = vmatpush1.msra.mxu0 %v423
        %456 = vmatprep.subr.mxu0 0.0
        %457 = vmatpush1.msra.mxu0 %v422
        %458 = vmatprep.subr.mxu0 0.0
        %459 = vmatpush1.msra.mxu0 %v421
        %460 = vmatprep.subr.mxu0 0.0
        %461 = vmatpush1.msra.mxu0 %v420
        %462 = vmatprep.subr.mxu0 0.0
        %463 = vmatpush1.msra.mxu0 %v419
        %464 = vmatprep.subr.mxu0 0.0
        %465 = vmatpush1.msra.mxu0 %v418
        %466 = vmatprep.subr.mxu0 0.0
        %467 = vmatpush1.msra.mxu0 %v417
        %468 = vmatprep.subr.mxu0 0.0
        %469 = vmatpush2.msra.mxu0 0.0
        %470 = vmatprep.subr.mxu0 0.0
        %471 = vmatpush2.msra.mxu0 0.0
        %472 = vmatprep.subr.mxu0 0.0
        %473 = vmatpush2.msra.mxu0 0.0
        %474 = vmatprep.subr.mxu0 0.0
        %475 = vmatpush2.msra.mxu0 0.0
        %476 = vmatprep.subr.mxu0 0.0
        %477 = vmatpush2.msra.mxu0 0.0
        %478 = vmatprep.subr.mxu0 0.0
        %479 = vmatpush2.msra.mxu0 0.0
        %480 = vmatprep.subr.mxu0 0.0
        %481 = vmatpush2.msra.mxu0 0.0
        %482 = vmatprep.subr.mxu0 0.0
        %483 = vmatpush2.msra.mxu0 0.0
        %484 = vmatprep.subr.mxu0 0.0
        %485 = vmatpush2.msra.mxu0 0.0
        %486 = vmatprep.subr.mxu0 0.0
        %487 = vmatpush2.msra.mxu0 0.0
        %488 = vmatprep.subr.mxu0 0.0
        %489 = vmatpush2.msra.mxu0 0.0
        %490 = vmatprep.subr.mxu0 0.0
        %491 = vmatpush2.msra.mxu0 0.0
        %492 = vmatprep.subr.mxu0 0.0
        %493 = vmatpush2.msra.mxu0 0.0
        %494 = vmatprep.subr.mxu0 0.0
        %495 = vmatpush2.msra.mxu0 0.0
        %496 = vmatprep.subr.mxu0 0.0
        %497 = vmatpush2.msra.mxu0 0.0
        %498 = vmatprep.subr.mxu0 0.0
        %499 = vmatpush2.msra.mxu0 0.0
        %500 = vmatprep.mubr.f32.mxu0 0.0
        %501 = vmatmul.mubr.f32.gmra.mxu0 %v434
        %v502 = vpop.f32.mrf.mxu0
        %v503 = vadd.f32 %v430, %v502
        %v504 = vpop.f32.mrf.mxu0
        %505 = vdwg.mxu0
        %506 = vst [vmem:[%s307] sm:$0xff] %v503
        %s507 = sand.u32 %s168, 1
        %s508 = scalar_lea.sflag [#allocation4], %s507
        %s509 = sand.u32 %s168, 1
        %s510 = smul.addr %s509, 8
        %s511 = scalar_lea.vmem [#allocation8], %s510
        // Predicated region
        $region53: #{tpu_custom_call.1} parent=39 // pred_check
          %p512 = pneg %p178
        $region54: #{tpu_custom_call.1} parent=39 // pred_check_branch
          %514 = sbr.rel (%p512) target = $region56
        $region55: #{tpu_custom_call.1} parent=39 // pred_region
          %s516 = ssub.s32 128, 128
          %517 = vsyncadd %s508, %s516
          %s518 = smul.addr %s27, 128
          %s519 = scalar_lea.hbm %s5, %s518
          %s521 = sshll.u32 %s511, 4
          %s522 = int_to_ptr.vmem [resolvable:$true] %s521
          %524 = dma.vmem_to_hbm [thread:$0]  %s522, 128, %s519, %s508
        $region56: #{tpu_custom_call.1} parent=39 // pred_fallthru
          _
      $region40: #{tpu_custom_call.1} parent=5 // pred_fallthru
        _
      %p525 = scmp.le.s32.totalorder 2, %s18
      // Predicated region
      $region57: #{tpu_custom_call.1} parent=5 // pred_check
        %p526 = pneg %p525
      $region58: #{tpu_custom_call.1} parent=5 // pred_check_branch
        %528 = sbr.rel (%p526) target = $region60
      $region59: #{tpu_custom_call.1} parent=5 // pred_region
        %s529 = ssub.s32 %s18, 2
        // Predicated region
        $region61: #{tpu_custom_call.1} parent=59 // pred_check
          %p530 = pneg %p184
        $region62: #{tpu_custom_call.1} parent=59 // pred_check_branch
          %532 = sbr.rel (%p530) target = $region64
        $region63: #{tpu_custom_call.1} parent=59 // pred_region
          %s533 = sand.u32 %s169, 1
          %s534 = scalar_lea.sflag [#allocation4], %s533
          %s535 = sand.u32 %s169, 1
          %s536 = smul.addr %s535, 8
          %s537 = scalar_lea.vmem [#allocation8], %s536
          %538 = dma.done %s534, 128
        $region64: #{tpu_custom_call.1} parent=59 // pred_fallthru
          _
      $region60: #{tpu_custom_call.1} parent=5 // pred_fallthru
        _
    $region6: #{tpu_custom_call.1} parent=1 // loop_footer
      %s22 = sadd.s32 1, %s18
    $region7: #{tpu_custom_call.1} parent=1 // loop_footer_branch
      %17 = sbr.rel target = $region3
    $region8: #{tpu_custom_call.1} parent=1 // loop_exit
      _
    %539 = vsyncpa [#allocation3], 1
    %s540 = scalar_lea.sflag [#allocation3], 1
    %541 = vsyncpa %s540, 1
    %542 = vsyncpa [#allocation6], 1
    %543 = vsyncpa [#allocation4], 1
    %s544 = scalar_lea.sflag [#allocation4], 1
    %545 = vsyncpa %s544, 1

</llo_original>
